<compile_context>
chip_gen: v5e
topology: v5e:2x2
jax: 0.10.0
libtpu: 0.0.40
codegen_flags: <defaults>
</compile_context>

<pallas_src>
import functools

import jax
import jax.numpy as jnp
from jax.experimental import pallas as pl
from jax.experimental.pallas import tpu as pltpu

_LANES = 128
_BLOCK_ROWS = 1024                     # streaming tile: (1024, 128) f32 = 512 KiB/buffer
_FUSED_VMEM_BUDGET = 8 * 1024 * 1024   # in+out bytes allowed for the gridless fused path


def _hardsigmoid(v):
    # hardsigmoid(v) = relu6(v + 3) / 6 = clamp(v + 3, 0, 6) / 6
    return jnp.clip(v + 3.0, 0.0, 6.0) * (1.0 / 6.0)


def _apply(in_ref, out_ref, double):
    v = _hardsigmoid(in_ref[...] * 2.0 - 1.0)
    if double:
        v = _hardsigmoid(v)
    out_ref[...] = v.astype(out_ref.dtype)


def _fused_kernel(x_ref, y_ref, z_ref, w_ref, xo_ref, yo_ref, zo_ref, wo_ref):
    # x / y / z: hardsigmoid(2v - 1);  w: hardsigmoid(hardsigmoid(2v - 1)).
    _apply(x_ref, xo_ref, double=False)
    _apply(y_ref, yo_ref, double=False)
    _apply(z_ref, zo_ref, double=False)
    _apply(w_ref, wo_ref, double=True)


def _stream_kernel(x_ref, o_ref, *, double):
    _apply(x_ref, o_ref, double=double)


def _hardsigmoid_streamed(a, *, double):
    """Lane-dense tiled path for tensors too large to be whole-array VMEM resident."""
    n = a.size
    sublanes = max(8, 32 // a.dtype.itemsize)        # 8 for f32, 16 for bf16, ...
    tile = sublanes * _LANES
    padded = -(-n // tile) * tile
    flat = a.reshape(-1)                              # contiguous flatten: free
    if padded != n:                                   # tiny (< one tile) tail pad
        flat = jnp.pad(flat, (0, padded - n))
    rows = padded // _LANES
    block_rows = min(rows, _BLOCK_ROWS)
    out2d = pl.pallas_call(
        functools.partial(_stream_kernel, double=double),
        out_shape=jax.ShapeDtypeStruct((rows, _LANES), a.dtype),
        grid=(pl.cdiv(rows, block_rows),),
        in_specs=[pl.BlockSpec((block_rows, _LANES), lambda i: (i, 0))],
        out_specs=pl.BlockSpec((block_rows, _LANES), lambda i: (i, 0)),
        compiler_params=pltpu.CompilerParams(
            # On v7x this axis can be pltpu.CORE_PARALLEL to shard across both TCs.
            dimension_semantics=("parallel",)),
        input_output_aliases={0: 0},
    )(flat.reshape(rows, _LANES))
    out = out2d.reshape(-1)
    if padded != n:
        out = out[:n]
    return out.reshape(a.shape)


@jax.jit
def model_forward(x, y, z, w):
    tensors = (x, y, z, w)
    doubles = (False, False, False, True)

    # Fused path: one pallas_call, 4 inputs -> 4 outputs, whole-array VMEM blocks.
    fused_bytes = sum(2 * a.size * a.dtype.itemsize for a in tensors)
    if fused_bytes <= _FUSED_VMEM_BUDGET:
        return pl.pallas_call(
            _fused_kernel,
            out_shape=tuple(jax.ShapeDtypeStruct(a.shape, a.dtype) for a in tensors),
        )(*tensors)

    # Large-input fallback: stream each tensor independently with tiled BlockSpecs.
    return tuple(_hardsigmoid_streamed(a, double=d) for a, d in zip(tensors, doubles))


if __name__ == "__main__":
    key = jax.random.PRNGKey(0)
    kx, ky, kz, kw = jax.random.split(key, 4)

    # Small shapes mirroring the ranks used by the original test (2D..5D);
    # range spans the hardsigmoid saturation regions.
    x = jax.random.uniform(kx, (1, 16), jnp.float32, minval=-3.0, maxval=3.0)
    y = jax.random.uniform(ky, (1, 12, 24), jnp.float32, minval=-3.0, maxval=3.0)
    z = jax.random.uniform(kz, (1, 12, 24, 32), jnp.float32, minval=-3.0, maxval=3.0)
    w = jax.random.uniform(kw, (1, 4, 8, 16, 16), jnp.float32, minval=-3.0, maxval=3.0)

    outs = jax.block_until_ready(model_forward(x, y, z, w))

    def hs(v):
        return jnp.clip(v + 3.0, 0.0, 6.0) / 6.0

    refs = (
        hs(x * 2.0 - 1.0),
        hs(y * 2.0 - 1.0),
        hs(z * 2.0 - 1.0),
        hs(hs(w * 2.0 - 1.0)),
    )
    for o, r in zip(outs, refs):
        assert o.shape == r.shape and o.dtype == r.dtype
        assert jnp.allclose(o, r, atol=1e-6, rtol=1e-6), "mismatch vs reference"

    print("KERNEL_OK")
</pallas_src>

<mosaic_0001>
module attributes {stable_mosaic.version = 11 : i64} {
  func.func @_fused_kernel(%arg0: memref<1x16xf32, #tpu.memory_space<vmem>>, %arg1: memref<1x12x24xf32, #tpu.memory_space<vmem>>, %arg2: memref<1x12x24x32xf32, #tpu.memory_space<vmem>>, %arg3: memref<1x4x8x16x16xf32, #tpu.memory_space<vmem>>, %arg4: memref<1x16xf32, #tpu.memory_space<vmem>>, %arg5: memref<1x12x24xf32, #tpu.memory_space<vmem>>, %arg6: memref<1x12x24x32xf32, #tpu.memory_space<vmem>>, %arg7: memref<1x4x8x16x16xf32, #tpu.memory_space<vmem>>) attributes {dimension_semantics = [], scalar_prefetch = 0 : i64, scratch_operands = 0 : i64, tpu.core_type = #tpu.core_type<tc>} {
    %c0 = arith.constant 0 : index
    %c0_0 = arith.constant 0 : index
    %0 = vector.load %arg0[%c0, %c0_0] : memref<1x16xf32, #tpu.memory_space<vmem>>, vector<1x16xf32>
    %cst = arith.constant 2.000000e+00 : f32
    %1 = vector.broadcast %cst : f32 to vector<1x16xf32>
    %2 = arith.mulf %0, %1 : vector<1x16xf32>
    %cst_1 = arith.constant 1.000000e+00 : f32
    %3 = vector.broadcast %cst_1 : f32 to vector<1x16xf32>
    %4 = arith.subf %2, %3 : vector<1x16xf32>
    %cst_2 = arith.constant 3.000000e+00 : f32
    %5 = vector.broadcast %cst_2 : f32 to vector<1x16xf32>
    %6 = arith.addf %4, %5 : vector<1x16xf32>
    %cst_3 = arith.constant 0.000000e+00 : f32
    %cst_4 = arith.constant 6.000000e+00 : f32
    %7 = vector.broadcast %cst_3 : f32 to vector<1x16xf32>
    %8 = arith.maximumf %7, %6 : vector<1x16xf32>
    %9 = vector.broadcast %cst_4 : f32 to vector<1x16xf32>
    %10 = arith.minimumf %9, %8 : vector<1x16xf32>
    %cst_5 = arith.constant 0.166666672 : f32
    %11 = vector.broadcast %cst_5 : f32 to vector<1x16xf32>
    %12 = arith.mulf %10, %11 : vector<1x16xf32>
    %c0_6 = arith.constant 0 : index
    %c0_7 = arith.constant 0 : index
    %13 = vector.load %arg4[%c0_6, %c0_7] : memref<1x16xf32, #tpu.memory_space<vmem>>, vector<1x16xf32>
    tpu.vector_store %arg4[%c0_6, %c0_7], %12 {strides = array<i32>} : memref<1x16xf32, #tpu.memory_space<vmem>>, vector<1x16xf32>,
    %c0_8 = arith.constant 0 : index
    %c0_9 = arith.constant 0 : index
    %c0_10 = arith.constant 0 : index
    %14 = vector.load %arg1[%c0_8, %c0_9, %c0_10] : memref<1x12x24xf32, #tpu.memory_space<vmem>>, vector<1x12x24xf32>
    %cst_11 = arith.constant 2.000000e+00 : f32
    %15 = vector.broadcast %cst_11 : f32 to vector<1x12x24xf32>
    %16 = arith.mulf %14, %15 : vector<1x12x24xf32>
    %cst_12 = arith.constant 1.000000e+00 : f32
    %17 = vector.broadcast %cst_12 : f32 to vector<1x12x24xf32>
    %18 = arith.subf %16, %17 : vector<1x12x24xf32>
    %cst_13 = arith.constant 3.000000e+00 : f32
    %19 = vector.broadcast %cst_13 : f32 to vector<1x12x24xf32>
    %20 = arith.addf %18, %19 : vector<1x12x24xf32>
    %cst_14 = arith.constant 0.000000e+00 : f32
    %cst_15 = arith.constant 6.000000e+00 : f32
    %21 = vector.broadcast %cst_14 : f32 to vector<1x12x24xf32>
    %22 = arith.maximumf %21, %20 : vector<1x12x24xf32>
    %23 = vector.broadcast %cst_15 : f32 to vector<1x12x24xf32>
    %24 = arith.minimumf %23, %22 : vector<1x12x24xf32>
    %cst_16 = arith.constant 0.166666672 : f32
    %25 = vector.broadcast %cst_16 : f32 to vector<1x12x24xf32>
    %26 = arith.mulf %24, %25 : vector<1x12x24xf32>
    %c0_17 = arith.constant 0 : index
    %c0_18 = arith.constant 0 : index
    %c0_19 = arith.constant 0 : index
    %27 = vector.load %arg5[%c0_17, %c0_18, %c0_19] : memref<1x12x24xf32, #tpu.memory_space<vmem>>, vector<1x12x24xf32>
    tpu.vector_store %arg5[%c0_17, %c0_18, %c0_19], %26 {strides = array<i32>} : memref<1x12x24xf32, #tpu.memory_space<vmem>>, vector<1x12x24xf32>,
    %c0_20 = arith.constant 0 : index
    %c0_21 = arith.constant 0 : index
    %c0_22 = arith.constant 0 : index
    %c0_23 = arith.constant 0 : index
    %28 = vector.load %arg2[%c0_20, %c0_21, %c0_22, %c0_23] : memref<1x12x24x32xf32, #tpu.memory_space<vmem>>, vector<1x12x24x32xf32>
    %cst_24 = arith.constant 2.000000e+00 : f32
    %29 = vector.broadcast %cst_24 : f32 to vector<1x12x24x32xf32>
    %30 = arith.mulf %28, %29 : vector<1x12x24x32xf32>
    %cst_25 = arith.constant 1.000000e+00 : f32
    %31 = vector.broadcast %cst_25 : f32 to vector<1x12x24x32xf32>
    %32 = arith.subf %30, %31 : vector<1x12x24x32xf32>
    %cst_26 = arith.constant 3.000000e+00 : f32
    %33 = vector.broadcast %cst_26 : f32 to vector<1x12x24x32xf32>
    %34 = arith.addf %32, %33 : vector<1x12x24x32xf32>
    %cst_27 = arith.constant 0.000000e+00 : f32
    %cst_28 = arith.constant 6.000000e+00 : f32
    %35 = vector.broadcast %cst_27 : f32 to vector<1x12x24x32xf32>
    %36 = arith.maximumf %35, %34 : vector<1x12x24x32xf32>
    %37 = vector.broadcast %cst_28 : f32 to vector<1x12x24x32xf32>
    %38 = arith.minimumf %37, %36 : vector<1x12x24x32xf32>
    %cst_29 = arith.constant 0.166666672 : f32
    %39 = vector.broadcast %cst_29 : f32 to vector<1x12x24x32xf32>
    %40 = arith.mulf %38, %39 : vector<1x12x24x32xf32>
    %c0_30 = arith.constant 0 : index
    %c0_31 = arith.constant 0 : index
    %c0_32 = arith.constant 0 : index
    %c0_33 = arith.constant 0 : index
    %41 = vector.load %arg6[%c0_30, %c0_31, %c0_32, %c0_33] : memref<1x12x24x32xf32, #tpu.memory_space<vmem>>, vector<1x12x24x32xf32>
    tpu.vector_store %arg6[%c0_30, %c0_31, %c0_32, %c0_33], %40 {strides = array<i32>} : memref<1x12x24x32xf32, #tpu.memory_space<vmem>>, vector<1x12x24x32xf32>,
    %c0_34 = arith.constant 0 : index
    %c0_35 = arith.constant 0 : index
    %c0_36 = arith.constant 0 : index
    %c0_37 = arith.constant 0 : index
    %c0_38 = arith.constant 0 : index
    %42 = vector.load %arg3[%c0_34, %c0_35, %c0_36, %c0_37, %c0_38] : memref<1x4x8x16x16xf32, #tpu.memory_space<vmem>>, vector<1x4x8x16x16xf32>
    %cst_39 = arith.constant 2.000000e+00 : f32
    %43 = vector.broadcast %cst_39 : f32 to vector<1x4x8x16x16xf32>
    %44 = arith.mulf %42, %43 : vector<1x4x8x16x16xf32>
    %cst_40 = arith.constant 1.000000e+00 : f32
    %45 = vector.broadcast %cst_40 : f32 to vector<1x4x8x16x16xf32>
    %46 = arith.subf %44, %45 : vector<1x4x8x16x16xf32>
    %cst_41 = arith.constant 3.000000e+00 : f32
    %47 = vector.broadcast %cst_41 : f32 to vector<1x4x8x16x16xf32>
    %48 = arith.addf %46, %47 : vector<1x4x8x16x16xf32>
    %cst_42 = arith.constant 0.000000e+00 : f32
    %cst_43 = arith.constant 6.000000e+00 : f32
    %49 = vector.broadcast %cst_42 : f32 to vector<1x4x8x16x16xf32>
    %50 = arith.maximumf %49, %48 : vector<1x4x8x16x16xf32>
    %51 = vector.broadcast %cst_43 : f32 to vector<1x4x8x16x16xf32>
    %52 = arith.minimumf %51, %50 : vector<1x4x8x16x16xf32>
    %cst_44 = arith.constant 0.166666672 : f32
    %53 = vector.broadcast %cst_44 : f32 to vector<1x4x8x16x16xf32>
    %54 = arith.mulf %52, %53 : vector<1x4x8x16x16xf32>
    %cst_45 = arith.constant 3.000000e+00 : f32
    %55 = vector.broadcast %cst_45 : f32 to vector<1x4x8x16x16xf32>
    %56 = arith.addf %54, %55 : vector<1x4x8x16x16xf32>
    %cst_46 = arith.constant 0.000000e+00 : f32
    %cst_47 = arith.constant 6.000000e+00 : f32
    %57 = vector.broadcast %cst_46 : f32 to vector<1x4x8x16x16xf32>
    %58 = arith.maximumf %57, %56 : vector<1x4x8x16x16xf32>
    %59 = vector.broadcast %cst_47 : f32 to vector<1x4x8x16x16xf32>
    %60 = arith.minimumf %59, %58 : vector<1x4x8x16x16xf32>
    %cst_48 = arith.constant 0.166666672 : f32
    %61 = vector.broadcast %cst_48 : f32 to vector<1x4x8x16x16xf32>
    %62 = arith.mulf %60, %61 : vector<1x4x8x16x16xf32>
    %c0_49 = arith.constant 0 : index
    %c0_50 = arith.constant 0 : index
    %c0_51 = arith.constant 0 : index
    %c0_52 = arith.constant 0 : index
    %c0_53 = arith.constant 0 : index
    %63 = vector.load %arg7[%c0_49, %c0_50, %c0_51, %c0_52, %c0_53] : memref<1x4x8x16x16xf32, #tpu.memory_space<vmem>>, vector<1x4x8x16x16xf32>
    tpu.vector_store %arg7[%c0_49, %c0_50, %c0_51, %c0_52, %c0_53], %62 {strides = array<i32>} : memref<1x4x8x16x16xf32, #tpu.memory_space<vmem>>, vector<1x4x8x16x16xf32>,
    return
  }
}

</mosaic_0001>

<llo_original>
// kernel: model_forward.1
$region0: #{model_forward.1}
  #allocation0 [shape = 'u32[]', space=smem, size = 0x4, offset = 0x4, fixed_abs, tag = 'smem constant byte address 0x4 - core index']
  #allocation1 [shape = 'u32[72,128]{1,0:T(1,128)}', space=vmem, size = 0x9000, scoped, tag = 'internal scratch']
  %s0 = inlined_call_operand.vmem [shape: f32[1,16], index: 0, kind: input, shape index: {}]
  %s1 = inlined_call_operand.vmem [shape: f32[1,12,24], index: 1, kind: input, shape index: {}]
  %s2 = inlined_call_operand.hbm [shape: f32[1,12,24,32], index: 2, kind: input, shape index: {}]
  %s3 = inlined_call_operand.hbm [shape: f32[1,4,8,16,16], index: 3, kind: input, shape index: {}]
  %s4 = inlined_call_operand.hbm [shape: f32[1,16], index: 4, kind: output, shape index: {0}]
  %s5 = inlined_call_operand.vmem [shape: f32[1,12,24], index: 5, kind: output, shape index: {1}]
  %s6 = inlined_call_operand.hbm [shape: f32[1,12,24,32], index: 6, kind: output, shape index: {2}]
  %s7 = inlined_call_operand.hbm [shape: f32[1,4,8,16,16], index: 7, kind: output, shape index: {3}]
  %8 = xla_tuple %s4, %s5, %s6, %s7
  %s9 = sld [smem:[#allocation0]]
  $region58: #{model_forward.1} parent=0
    _
  %s11 = ssub.s32 1, %s9
  %s12 = scalar_select 0, %s11, %s9
  $region1: #{model_forward.1} parent=0
    #allocation2 [shape = 'u8[147456]{0}', space=vmem, size = 0x24000, scoped, tag = 'input window, operand 2, single buffered']
    #allocation3 [shape = 's32[1]{0}', space=sflag, size = 0x4, scoped, tag = 'scoped memory for model_forward.1']
    #allocation4 [shape = 's32[1]{0}', space=sflag, size = 0x4, scoped, tag = 'scoped memory for model_forward.1']
    #allocation5 [shape = 'u8[262144]{0}', space=vmem, size = 0x40000, scoped, tag = 'input window, operand 3, single buffered']
    #allocation6 [shape = 's32[1]{0}', space=sflag, size = 0x4, scoped, tag = 'scoped memory for model_forward.1']
    #allocation7 [shape = 'u8[512]{0}', space=vmem, size = 0x400, scoped, tag = 'output window, operand 0, single buffered']
    #allocation8 [shape = 'u8[147456]{0}', space=vmem, size = 0x24000, scoped, tag = 'output window, operand 2, single buffered']
    #allocation9 [shape = 's32[1]{0}', space=sflag, size = 0x4, scoped, tag = 'scoped memory for model_forward.1']
    #allocation10 [shape = 'u8[262144]{0}', space=vmem, size = 0x40000, scoped, tag = 'output window, operand 3, single buffered']
    %13 = vsyncpa [#allocation3], 0
    %14 = vsyncpa [#allocation6], 0
    %15 = vsyncpa [#allocation4], 0
    %16 = vsyncpa [#allocation9], 0
    // Predicated region
    $region2: #{model_forward.1} parent=1 // pred_check
      _
    $region3: #{model_forward.1} parent=1 // pred_check_branch
      %18 = sbr.rel (0) target = $region5
    $region4: #{model_forward.1} parent=1 // pred_region
      _
    $region5: #{model_forward.1} parent=1 // pred_fallthru
      _
    // Predicated region
    $region6: #{model_forward.1} parent=1 // pred_check
      _
    $region7: #{model_forward.1} parent=1 // pred_check_branch
      %20 = sbr.rel (0) target = $region9
    $region8: #{model_forward.1} parent=1 // pred_region
      _
    $region9: #{model_forward.1} parent=1 // pred_fallthru
      _
    // Predicated region
    $region10: #{model_forward.1} parent=1 // pred_check
      _
    $region11: #{model_forward.1} parent=1 // pred_check_branch
      %22 = sbr.rel (0) target = $region13
    $region12: #{model_forward.1} parent=1 // pred_region
      %24 = vsyncadd [#allocation3], 0
      %s25 = sshll.u32 %s2, 4
      %s26 = int_to_ptr.hbm [resolvable:$true] %s25
      %s27 = sshll.u32 [#allocation2], 4
      %s28 = int_to_ptr.vmem [resolvable:$true] %s27
      %33 = dma.hbm_to_vmem [thread:$0]  %s26, 4608, %s28, [#allocation3], 128, 128, 8
    $region13: #{model_forward.1} parent=1 // pred_fallthru
      _
    // Predicated region
    $region14: #{model_forward.1} parent=1 // pred_check
      _
    $region15: #{model_forward.1} parent=1 // pred_check_branch
      %35 = sbr.rel (0) target = $region17
    $region16: #{model_forward.1} parent=1 // pred_region
      %37 = vsyncadd [#allocation6], 0
      %s38 = sshll.u32 %s3, 4
      %s39 = int_to_ptr.hbm [resolvable:$true] %s38
      %s40 = sshll.u32 [#allocation5], 4
      %s41 = int_to_ptr.vmem [resolvable:$true] %s40
      %46 = dma.hbm_to_vmem [thread:$0]  %s39, 8192, %s41, [#allocation6], 128, 128, 8
    $region17: #{model_forward.1} parent=1 // pred_fallthru
      _
    // Predicated region
    $region18: #{model_forward.1} parent=1 // pred_check
      _
    $region19: #{model_forward.1} parent=1 // pred_check_branch
      %48 = sbr.rel (0) target = $region21
    $region20: #{model_forward.1} parent=1 // pred_region
      %50 = dma.done [#allocation3], 4608
    $region21: #{model_forward.1} parent=1 // pred_fallthru
      _
    // Predicated region
    $region22: #{model_forward.1} parent=1 // pred_check
      _
    $region23: #{model_forward.1} parent=1 // pred_check_branch
      %52 = sbr.rel (0) target = $region25
    $region24: #{model_forward.1} parent=1 // pred_region
      %54 = dma.done [#allocation6], 8192
    $region25: #{model_forward.1} parent=1 // pred_fallthru
      _
    %v55 = vld [vmem:[%s0] sm:$0x1]
    %v56 = vmul.f32 %v55, 2.0
    %v57 = vsub.f32 %v56, 1.0
    %v58 = vadd.f32 %v57, 3.0
    %v59 = vmax.f32 %v58, 0.0
    %v60 = vmin.f32 %v59, 6.0
    %v61 = vmul.f32 %v60, 0.16666667
    %vm62 = vcmask 122880
    %63 = vst.msk [vmem:[#allocation7] sm:$0x1] %vm62, %v61
    %v64 = vld [vmem:[%s1] sm:$0xff]
    %v65 = vld [vmem:[%s1 + $0x8] sm:$0xf]
    %v66 = vmul.f32 %v64, 2.0
    %v67 = vmul.f32 %v65, 2.0
    %v68 = vsub.f32 %v66, 1.0
    %v69 = vsub.f32 %v67, 1.0
    %v70 = vadd.f32 %v68, 3.0
    %v71 = vadd.f32 %v69, 3.0
    %v72 = vmax.f32 %v70, 0.0
    %v73 = vmax.f32 %v71, 0.0
    %v74 = vmin.f32 %v72, 6.0
    %v75 = vmin.f32 %v73, 6.0
    %v76 = vmul.f32 %v74, 0.16666667
    %v77 = vmul.f32 %v75, 0.16666667
    %vm78 = vcmask 195584
    %79 = vst.msk [vmem:[%s5] sm:$0xff] %vm78, %v76
    %vm80 = vcmask 191488
    %81 = vst.msk [vmem:[%s5 + $0x8] sm:$0xf] %vm80, %v77
    %v82 = vld [vmem:[#allocation2] sm:$0xff]
    %v83 = vld [vmem:[#allocation2 + $0x8] sm:$0xff]
    %v84 = vld [vmem:[#allocation2 + $0x10] sm:$0xff]
    %v85 = vld [vmem:[#allocation2 + $0x18] sm:$0xff]
    %v86 = vld [vmem:[#allocation2 + $0x20] sm:$0xff]
    %v87 = vld [vmem:[#allocation2 + $0x28] sm:$0xff]
    %v88 = vld [vmem:[#allocation2 + $0x30] sm:$0xff]
    %v89 = vld [vmem:[#allocation2 + $0x38] sm:$0xff]
    %v90 = vld [vmem:[#allocation2 + $0x40] sm:$0xff]
    %v91 = vld [vmem:[#allocation2 + $0x48] sm:$0xff]
    %v92 = vld [vmem:[#allocation2 + $0x50] sm:$0xff]
    %v93 = vld [vmem:[#allocation2 + $0x58] sm:$0xff]
    %v94 = vld [vmem:[#allocation2 + $0x60] sm:$0xff]
    %v95 = vld [vmem:[#allocation2 + $0x68] sm:$0xff]
    %v96 = vld [vmem:[#allocation2 + $0x70] sm:$0xff]
    %v97 = vld [vmem:[#allocation2 + $0x78] sm:$0xff]
    %v98 = vld [vmem:[#allocation2 + $0x80] sm:$0xff]
    %v99 = vld [vmem:[#allocation2 + $0x88] sm:$0xff]
    %v100 = vld [vmem:[#allocation2 + $0x90] sm:$0xff]
    %v101 = vld [vmem:[#allocation2 + $0x98] sm:$0xff]
    %v102 = vld [vmem:[#allocation2 + $0xa0] sm:$0xff]
    %v103 = vld [vmem:[#allocation2 + $0xa8] sm:$0xff]
    %v104 = vld [vmem:[#allocation2 + $0xb0] sm:$0xff]
    %v105 = vld [vmem:[#allocation2 + $0xb8] sm:$0xff]
    %v106 = vld [vmem:[#allocation2 + $0xc0] sm:$0xff]
    %v107 = vld [vmem:[#allocation2 + $0xc8] sm:$0xff]
    %v108 = vld [vmem:[#allocation2 + $0xd0] sm:$0xff]
    %v109 = vld [vmem:[#allocation2 + $0xd8] sm:$0xff]
    %v110 = vld [vmem:[#allocation2 + $0xe0] sm:$0xff]
    %v111 = vld [vmem:[#allocation2 + $0xe8] sm:$0xff]
    %v112 = vld [vmem:[#allocation2 + $0xf0] sm:$0xff]
    %v113 = vld [vmem:[#allocation2 + $0xf8] sm:$0xff]
    %v114 = vld [vmem:[#allocation2 + $0x100] sm:$0xff]
    %v115 = vld [vmem:[#allocation2 + $0x108] sm:$0xff]
    %v116 = vld [vmem:[#allocation2 + $0x110] sm:$0xff]
    %v117 = vld [vmem:[#allocation2 + $0x118] sm:$0xff]
    %v118 = vmul.f32 %v82, 2.0
    %v119 = vmul.f32 %v83, 2.0
    %v120 = vmul.f32 %v84, 2.0
    %v121 = vmul.f32 %v85, 2.0
    %v122 = vmul.f32 %v86, 2.0
    %v123 = vmul.f32 %v87, 2.0
    %v124 = vmul.f32 %v88, 2.0
    %v125 = vmul.f32 %v89, 2.0
    %v126 = vmul.f32 %v90, 2.0
    %v127 = vmul.f32 %v91, 2.0
    %v128 = vmul.f32 %v92, 2.0
    %v129 = vmul.f32 %v93, 2.0
    %v130 = vmul.f32 %v94, 2.0
    %v131 = vmul.f32 %v95, 2.0
    %v132 = vmul.f32 %v96, 2.0
    %v133 = vmul.f32 %v97, 2.0
    %v134 = vmul.f32 %v98, 2.0
    %v135 = vmul.f32 %v99, 2.0
    %v136 = vmul.f32 %v100, 2.0
    %v137 = vmul.f32 %v101, 2.0
    %v138 = vmul.f32 %v102, 2.0
    %v139 = vmul.f32 %v103, 2.0
    %v140 = vmul.f32 %v104, 2.0
    %v141 = vmul.f32 %v105, 2.0
    %v142 = vmul.f32 %v106, 2.0
    %v143 = vmul.f32 %v107, 2.0
    %v144 = vmul.f32 %v108, 2.0
    %v145 = vmul.f32 %v109, 2.0
    %v146 = vmul.f32 %v110, 2.0
    %v147 = vmul.f32 %v111, 2.0
    %v148 = vmul.f32 %v112, 2.0
    %v149 = vmul.f32 %v113, 2.0
    %v150 = vmul.f32 %v114, 2.0
    %v151 = vmul.f32 %v115, 2.0
    %v152 = vmul.f32 %v116, 2.0
    %v153 = vmul.f32 %v117, 2.0
    %v154 = vsub.f32 %v118, 1.0
    %v155 = vsub.f32 %v119, 1.0
    %v156 = vsub.f32 %v120, 1.0
    %v157 = vsub.f32 %v121, 1.0
    %v158 = vsub.f32 %v122, 1.0
    %v159 = vsub.f32 %v123, 1.0
    %v160 = vsub.f32 %v124, 1.0
    %v161 = vsub.f32 %v125, 1.0
    %v162 = vsub.f32 %v126, 1.0
    %v163 = vsub.f32 %v127, 1.0
    %v164 = vsub.f32 %v128, 1.0
    %v165 = vsub.f32 %v129, 1.0
    %v166 = vsub.f32 %v130, 1.0
    %v167 = vsub.f32 %v131, 1.0
    %v168 = vsub.f32 %v132, 1.0
    %v169 = vsub.f32 %v133, 1.0
    %v170 = vsub.f32 %v134, 1.0
    %v171 = vsub.f32 %v135, 1.0
    %v172 = vsub.f32 %v136, 1.0
    %v173 = vsub.f32 %v137, 1.0
    %v174 = vsub.f32 %v138, 1.0
    %v175 = vsub.f32 %v139, 1.0
    %v176 = vsub.f32 %v140, 1.0
    %v177 = vsub.f32 %v141, 1.0
    %v178 = vsub.f32 %v142, 1.0
    %v179 = vsub.f32 %v143, 1.0
    %v180 = vsub.f32 %v144, 1.0
    %v181 = vsub.f32 %v145, 1.0
    %v182 = vsub.f32 %v146, 1.0
    %v183 = vsub.f32 %v147, 1.0
    %v184 = vsub.f32 %v148, 1.0
    %v185 = vsub.f32 %v149, 1.0
    %v186 = vsub.f32 %v150, 1.0
    %v187 = vsub.f32 %v151, 1.0
    %v188 = vsub.f32 %v152, 1.0
    %v189 = vsub.f32 %v153, 1.0
    %v190 = vadd.f32 %v154, 3.0
    %v191 = vadd.f32 %v155, 3.0
    %v192 = vadd.f32 %v156, 3.0
    %v193 = vadd.f32 %v157, 3.0
    %v194 = vadd.f32 %v158, 3.0
    %v195 = vadd.f32 %v159, 3.0
    %v196 = vadd.f32 %v160, 3.0
    %v197 = vadd.f32 %v161, 3.0
    %v198 = vadd.f32 %v162, 3.0
    %v199 = vadd.f32 %v163, 3.0
    %v200 = vadd.f32 %v164, 3.0
    %v201 = vadd.f32 %v165, 3.0
    %v202 = vadd.f32 %v166, 3.0
    %v203 = vadd.f32 %v167, 3.0
    %v204 = vadd.f32 %v168, 3.0
    %v205 = vadd.f32 %v169, 3.0
    %v206 = vadd.f32 %v170, 3.0
    %v207 = vadd.f32 %v171, 3.0
    %v208 = vadd.f32 %v172, 3.0
    %v209 = vadd.f32 %v173, 3.0
    %v210 = vadd.f32 %v174, 3.0
    %v211 = vadd.f32 %v175, 3.0
    %v212 = vadd.f32 %v176, 3.0
    %v213 = vadd.f32 %v177, 3.0
    %v214 = vadd.f32 %v178, 3.0
    %v215 = vadd.f32 %v179, 3.0
    %v216 = vadd.f32 %v180, 3.0
    %v217 = vadd.f32 %v181, 3.0
    %v218 = vadd.f32 %v182, 3.0
    %v219 = vadd.f32 %v183, 3.0
    %v220 = vadd.f32 %v184, 3.0
    %v221 = vadd.f32 %v185, 3.0
    %v222 = vadd.f32 %v186, 3.0
    %v223 = vadd.f32 %v187, 3.0
    %v224 = vadd.f32 %v188, 3.0
    %v225 = vadd.f32 %v189, 3.0
    %v226 = vmax.f32 %v190, 0.0
    %v227 = vmax.f32 %v191, 0.0
    %v228 = vmax.f32 %v192, 0.0
    %v229 = vmax.f32 %v193, 0.0
    %v230 = vmax.f32 %v194, 0.0
    %v231 = vmax.f32 %v195, 0.0
    %v232 = vmax.f32 %v196, 0.0
    %v233 = vmax.f32 %v197, 0.0
    %v234 = vmax.f32 %v198, 0.0
    %v235 = vmax.f32 %v199, 0.0
    %v236 = vmax.f32 %v200, 0.0
    %v237 = vmax.f32 %v201, 0.0
    %v238 = vmax.f32 %v202, 0.0
    %v239 = vmax.f32 %v203, 0.0
    %v240 = vmax.f32 %v204, 0.0
    %v241 = vmax.f32 %v205, 0.0
    %v242 = vmax.f32 %v206, 0.0
    %v243 = vmax.f32 %v207, 0.0
    %v244 = vmax.f32 %v208, 0.0
    %v245 = vmax.f32 %v209, 0.0
    %v246 = vmax.f32 %v210, 0.0
    %v247 = vmax.f32 %v211, 0.0
    %v248 = vmax.f32 %v212, 0.0
    %v249 = vmax.f32 %v213, 0.0
    %v250 = vmax.f32 %v214, 0.0
    %v251 = vmax.f32 %v215, 0.0
    %v252 = vmax.f32 %v216, 0.0
    %v253 = vmax.f32 %v217, 0.0
    %v254 = vmax.f32 %v218, 0.0
    %v255 = vmax.f32 %v219, 0.0
    %v256 = vmax.f32 %v220, 0.0
    %v257 = vmax.f32 %v221, 0.0
    %v258 = vmax.f32 %v222, 0.0
    %v259 = vmax.f32 %v223, 0.0
    %v260 = vmax.f32 %v224, 0.0
    %v261 = vmax.f32 %v225, 0.0
    %v262 = vmin.f32 %v226, 6.0
    %v263 = vmin.f32 %v227, 6.0
    %v264 = vmin.f32 %v228, 6.0
    %v265 = vmin.f32 %v229, 6.0
    %v266 = vmin.f32 %v230, 6.0
    %v267 = vmin.f32 %v231, 6.0
    %v268 = vmin.f32 %v232, 6.0
    %v269 = vmin.f32 %v233, 6.0
    %v270 = vmin.f32 %v234, 6.0
    %v271 = vmin.f32 %v235, 6.0
    %v272 = vmin.f32 %v236, 6.0
    %v273 = vmin.f32 %v237, 6.0
    %v274 = vmin.f32 %v238, 6.0
    %v275 = vmin.f32 %v239, 6.0
    %v276 = vmin.f32 %v240, 6.0
    %v277 = vmin.f32 %v241, 6.0
    %v278 = vmin.f32 %v242, 6.0
    %v279 = vmin.f32 %v243, 6.0
    %v280 = vmin.f32 %v244, 6.0
    %v281 = vmin.f32 %v245, 6.0
    %v282 = vmin.f32 %v246, 6.0
    %v283 = vmin.f32 %v247, 6.0
    %v284 = vmin.f32 %v248, 6.0
    %v285 = vmin.f32 %v249, 6.0
    %v286 = vmin.f32 %v250, 6.0
    %v287 = vmin.f32 %v251, 6.0
    %v288 = vmin.f32 %v252, 6.0
    %v289 = vmin.f32 %v253, 6.0
    %v290 = vmin.f32 %v254, 6.0
    %v291 = vmin.f32 %v255, 6.0
    %v292 = vmin.f32 %v256, 6.0
    %v293 = vmin.f32 %v257, 6.0
    %v294 = vmin.f32 %v258, 6.0
    %v295 = vmin.f32 %v259, 6.0
    %v296 = vmin.f32 %v260, 6.0
    %v297 = vmin.f32 %v261, 6.0
    %v298 = vmul.f32 %v262, 0.16666667
    %v299 = vmul.f32 %v263, 0.16666667
    %v300 = vmul.f32 %v264, 0.16666667
    %v301 = vmul.f32 %v265, 0.16666667
    %v302 = vmul.f32 %v266, 0.16666667
    %v303 = vmul.f32 %v267, 0.16666667
    %v304 = vmul.f32 %v268, 0.16666667
    %v305 = vmul.f32 %v269, 0.16666667
    %v306 = vmul.f32 %v270, 0.16666667
    %v307 = vmul.f32 %v271, 0.16666667
    %v308 = vmul.f32 %v272, 0.16666667
    %v309 = vmul.f32 %v273, 0.16666667
    %v310 = vmul.f32 %v274, 0.16666667
    %v311 = vmul.f32 %v275, 0.16666667
    %v312 = vmul.f32 %v276, 0.16666667
    %v313 = vmul.f32 %v277, 0.16666667
    %v314 = vmul.f32 %v278, 0.16666667
    %v315 = vmul.f32 %v279, 0.16666667
    %v316 = vmul.f32 %v280, 0.16666667
    %v317 = vmul.f32 %v281, 0.16666667
    %v318 = vmul.f32 %v282, 0.16666667
    %v319 = vmul.f32 %v283, 0.16666667
    %v320 = vmul.f32 %v284, 0.16666667
    %v321 = vmul.f32 %v285, 0.16666667
    %v322 = vmul.f32 %v286, 0.16666667
    %v323 = vmul.f32 %v287, 0.16666667
    %v324 = vmul.f32 %v288, 0.16666667
    %v325 = vmul.f32 %v289, 0.16666667
    %v326 = vmul.f32 %v290, 0.16666667
    %v327 = vmul.f32 %v291, 0.16666667
    %v328 = vmul.f32 %v292, 0.16666667
    %v329 = vmul.f32 %v293, 0.16666667
    %v330 = vmul.f32 %v294, 0.16666667
    %v331 = vmul.f32 %v295, 0.16666667
    %v332 = vmul.f32 %v296, 0.16666667
    %v333 = vmul.f32 %v297, 0.16666667
    %vm334 = vcmask 261120
    %335 = vst.msk [vmem:[#allocation8] sm:$0xff] %vm334, %v298
    %336 = vst.msk [vmem:[#allocation8 + $0x8] sm:$0xff] %vm334, %v299
    %337 = vst.msk [vmem:[#allocation8 + $0x10] sm:$0xff] %vm334, %v300
    %338 = vst.msk [vmem:[#allocation8 + $0x18] sm:$0xff] %vm334, %v301
    %339 = vst.msk [vmem:[#allocation8 + $0x20] sm:$0xff] %vm334, %v302
    %340 = vst.msk [vmem:[#allocation8 + $0x28] sm:$0xff] %vm334, %v303
    %341 = vst.msk [vmem:[#allocation8 + $0x30] sm:$0xff] %vm334, %v304
    %342 = vst.msk [vmem:[#allocation8 + $0x38] sm:$0xff] %vm334, %v305
    %343 = vst.msk [vmem:[#allocation8 + $0x40] sm:$0xff] %vm334, %v306
    %344 = vst.msk [vmem:[#allocation8 + $0x48] sm:$0xff] %vm334, %v307
    %345 = vst.msk [vmem:[#allocation8 + $0x50] sm:$0xff] %vm334, %v308
    %346 = vst.msk [vmem:[#allocation8 + $0x58] sm:$0xff] %vm334, %v309
    %347 = vst.msk [vmem:[#allocation8 + $0x60] sm:$0xff] %vm334, %v310
    %348 = vst.msk [vmem:[#allocation8 + $0x68] sm:$0xff] %vm334, %v311
    %349 = vst.msk [vmem:[#allocation8 + $0x70] sm:$0xff] %vm334, %v312
    %350 = vst.msk [vmem:[#allocation8 + $0x78] sm:$0xff] %vm334, %v313
    %351 = vst.msk [vmem:[#allocation8 + $0x80] sm:$0xff] %vm334, %v314
    %352 = vst.msk [vmem:[#allocation8 + $0x88] sm:$0xff] %vm334, %v315
    %353 = vst.msk [vmem:[#allocation8 + $0x90] sm:$0xff] %vm334, %v316
    %354 = vst.msk [vmem:[#allocation8 + $0x98] sm:$0xff] %vm334, %v317
    %355 = vst.msk [vmem:[#allocation8 + $0xa0] sm:$0xff] %vm334, %v318
    %356 = vst.msk [vmem:[#allocation8 + $0xa8] sm:$0xff] %vm334, %v319
    %357 = vst.msk [vmem:[#allocation8 + $0xb0] sm:$0xff] %vm334, %v320
    %358 = vst.msk [vmem:[#allocation8 + $0xb8] sm:$0xff] %vm334, %v321
    %359 = vst.msk [vmem:[#allocation8 + $0xc0] sm:$0xff] %vm334, %v322
    %360 = vst.msk [vmem:[#allocation8 + $0xc8] sm:$0xff] %vm334, %v323
    %361 = vst.msk [vmem:[#allocation8 + $0xd0] sm:$0xff] %vm334, %v324
    %362 = vst.msk [vmem:[#allocation8 + $0xd8] sm:$0xff] %vm334, %v325
    %363 = vst.msk [vmem:[#allocation8 + $0xe0] sm:$0xff] %vm334, %v326
    %364 = vst.msk [vmem:[#allocation8 + $0xe8] sm:$0xff] %vm334, %v327
    %365 = vst.msk [vmem:[#allocation8 + $0xf0] sm:$0xff] %vm334, %v328
    %366 = vst.msk [vmem:[#allocation8 + $0xf8] sm:$0xff] %vm334, %v329
    %367 = vst.msk [vmem:[#allocation8 + $0x100] sm:$0xff] %vm334, %v330
    %368 = vst.msk [vmem:[#allocation8 + $0x108] sm:$0xff] %vm334, %v331
    %369 = vst.msk [vmem:[#allocation8 + $0x110] sm:$0xff] %vm334, %v332
    %370 = vst.msk [vmem:[#allocation8 + $0x118] sm:$0xff] %vm334, %v333
    %v371 = vld [vmem:[#allocation5] sm:$0xff]
    %v372 = vld [vmem:[#allocation5 + $0x8] sm:$0xff]
    %v373 = vld [vmem:[#allocation5 + $0x10] sm:$0xff]
    %v374 = vld [vmem:[#allocation5 + $0x18] sm:$0xff]
    %v375 = vld [vmem:[#allocation5 + $0x20] sm:$0xff]
    %v376 = vld [vmem:[#allocation5 + $0x28] sm:$0xff]
    %v377 = vld [vmem:[#allocation5 + $0x30] sm:$0xff]
    %v378 = vld [vmem:[#allocation5 + $0x38] sm:$0xff]
    %v379 = vld [vmem:[#allocation5 + $0x40] sm:$0xff]
    %v380 = vld [vmem:[#allocation5 + $0x48] sm:$0xff]
    %v381 = vld [vmem:[#allocation5 + $0x50] sm:$0xff]
    %v382 = vld [vmem:[#allocation5 + $0x58] sm:$0xff]
    %v383 = vld [vmem:[#allocation5 + $0x60] sm:$0xff]
    %v384 = vld [vmem:[#allocation5 + $0x68] sm:$0xff]
    %v385 = vld [vmem:[#allocation5 + $0x70] sm:$0xff]
    %v386 = vld [vmem:[#allocation5 + $0x78] sm:$0xff]
    %v387 = vld [vmem:[#allocation5 + $0x80] sm:$0xff]
    %v388 = vld [vmem:[#allocation5 + $0x88] sm:$0xff]
    %v389 = vld [vmem:[#allocation5 + $0x90] sm:$0xff]
    %v390 = vld [vmem:[#allocation5 + $0x98] sm:$0xff]
    %v391 = vld [vmem:[#allocation5 + $0xa0] sm:$0xff]
    %v392 = vld [vmem:[#allocation5 + $0xa8] sm:$0xff]
    %v393 = vld [vmem:[#allocation5 + $0xb0] sm:$0xff]
    %v394 = vld [vmem:[#allocation5 + $0xb8] sm:$0xff]
    %v395 = vld [vmem:[#allocation5 + $0xc0] sm:$0xff]
    %v396 = vld [vmem:[#allocation5 + $0xc8] sm:$0xff]
    %v397 = vld [vmem:[#allocation5 + $0xd0] sm:$0xff]
    %v398 = vld [vmem:[#allocation5 + $0xd8] sm:$0xff]
    %v399 = vld [vmem:[#allocation5 + $0xe0] sm:$0xff]
    %v400 = vld [vmem:[#allocation5 + $0xe8] sm:$0xff]
    %v401 = vld [vmem:[#allocation5 + $0xf0] sm:$0xff]
    %v402 = vld [vmem:[#allocation5 + $0xf8] sm:$0xff]
    %v403 = vld [vmem:[#allocation5 + $0x100] sm:$0xff]
    %v404 = vld [vmem:[#allocation5 + $0x108] sm:$0xff]
    %v405 = vld [vmem:[#allocation5 + $0x110] sm:$0xff]
    %v406 = vld [vmem:[#allocation5 + $0x118] sm:$0xff]
    %v407 = vld [vmem:[#allocation5 + $0x120] sm:$0xff]
    %v408 = vld [vmem:[#allocation5 + $0x128] sm:$0xff]
    %v409 = vld [vmem:[#allocation5 + $0x130] sm:$0xff]
    %v410 = vld [vmem:[#allocation5 + $0x138] sm:$0xff]
    %v411 = vld [vmem:[#allocation5 + $0x140] sm:$0xff]
    %v412 = vld [vmem:[#allocation5 + $0x148] sm:$0xff]
    %v413 = vld [vmem:[#allocation5 + $0x150] sm:$0xff]
    %v414 = vld [vmem:[#allocation5 + $0x158] sm:$0xff]
    %v415 = vld [vmem:[#allocation5 + $0x160] sm:$0xff]
    %v416 = vld [vmem:[#allocation5 + $0x168] sm:$0xff]
    %v417 = vld [vmem:[#allocation5 + $0x170] sm:$0xff]
    %v418 = vld [vmem:[#allocation5 + $0x178] sm:$0xff]
    %v419 = vld [vmem:[#allocation5 + $0x180] sm:$0xff]
    %v420 = vld [vmem:[#allocation5 + $0x188] sm:$0xff]
    %v421 = vld [vmem:[#allocation5 + $0x190] sm:$0xff]
    %v422 = vld [vmem:[#allocation5 + $0x198] sm:$0xff]
    %v423 = vld [vmem:[#allocation5 + $0x1a0] sm:$0xff]
    %v424 = vld [vmem:[#allocation5 + $0x1a8] sm:$0xff]
    %v425 = vld [vmem:[#allocation5 + $0x1b0] sm:$0xff]
    %v426 = vld [vmem:[#allocation5 + $0x1b8] sm:$0xff]
    %v427 = vld [vmem:[#allocation5 + $0x1c0] sm:$0xff]
    %v428 = vld [vmem:[#allocation5 + $0x1c8] sm:$0xff]
    %v429 = vld [vmem:[#allocation5 + $0x1d0] sm:$0xff]
    %v430 = vld [vmem:[#allocation5 + $0x1d8] sm:$0xff]
    %v431 = vld [vmem:[#allocation5 + $0x1e0] sm:$0xff]
    %v432 = vld [vmem:[#allocation5 + $0x1e8] sm:$0xff]
    %v433 = vld [vmem:[#allocation5 + $0x1f0] sm:$0xff]
    %v434 = vld [vmem:[#allocation5 + $0x1f8] sm:$0xff]
    %v435 = vmul.f32 %v371, 2.0
    %v436 = vmul.f32 %v372, 2.0
    %v437 = vmul.f32 %v373, 2.0
    %v438 = vmul.f32 %v374, 2.0
    %v439 = vmul.f32 %v375, 2.0
    %v440 = vmul.f32 %v376, 2.0
    %v441 = vmul.f32 %v377, 2.0
    %v442 = vmul.f32 %v378, 2.0
    %v443 = vmul.f32 %v379, 2.0
    %v444 = vmul.f32 %v380, 2.0
    %v445 = vmul.f32 %v381, 2.0
    %v446 = vmul.f32 %v382, 2.0
    %v447 = vmul.f32 %v383, 2.0
    %v448 = vmul.f32 %v384, 2.0
    %v449 = vmul.f32 %v385, 2.0
    %v450 = vmul.f32 %v386, 2.0
    %v451 = vmul.f32 %v387, 2.0
    %v452 = vmul.f32 %v388, 2.0
    %v453 = vmul.f32 %v389, 2.0
    %v454 = vmul.f32 %v390, 2.0
    %v455 = vmul.f32 %v391, 2.0
    %v456 = vmul.f32 %v392, 2.0
    %v457 = vmul.f32 %v393, 2.0
    %v458 = vmul.f32 %v394, 2.0
    %v459 = vmul.f32 %v395, 2.0
    %v460 = vmul.f32 %v396, 2.0
    %v461 = vmul.f32 %v397, 2.0
    %v462 = vmul.f32 %v398, 2.0
    %v463 = vmul.f32 %v399, 2.0
    %v464 = vmul.f32 %v400, 2.0
    %v465 = vmul.f32 %v401, 2.0
    %v466 = vmul.f32 %v402, 2.0
    %v467 = vmul.f32 %v403, 2.0
    %v468 = vmul.f32 %v404, 2.0
    %v469 = vmul.f32 %v405, 2.0
    %v470 = vmul.f32 %v406, 2.0
    %v471 = vmul.f32 %v407, 2.0
    %v472 = vmul.f32 %v408, 2.0
    %v473 = vmul.f32 %v409, 2.0
    %v474 = vmul.f32 %v410, 2.0
    %v475 = vmul.f32 %v411, 2.0
    %v476 = vmul.f32 %v412, 2.0
    %v477 = vmul.f32 %v413, 2.0
    %v478 = vmul.f32 %v414, 2.0
    %v479 = vmul.f32 %v415, 2.0
    %v480 = vmul.f32 %v416, 2.0
    %v481 = vmul.f32 %v417, 2.0
    %v482 = vmul.f32 %v418, 2.0
    %v483 = vmul.f32 %v419, 2.0
    %v484 = vmul.f32 %v420, 2.0
    %v485 = vmul.f32 %v421, 2.0
    %v486 = vmul.f32 %v422, 2.0
    %v487 = vmul.f32 %v423, 2.0
    %v488 = vmul.f32 %v424, 2.0
    %v489 = vmul.f32 %v425, 2.0
    %v490 = vmul.f32 %v426, 2.0
    %v491 = vmul.f32 %v427, 2.0
    %v492 = vmul.f32 %v428, 2.0
    %v493 = vmul.f32 %v429, 2.0
    %v494 = vmul.f32 %v430, 2.0
    %v495 = vmul.f32 %v431, 2.0
    %v496 = vmul.f32 %v432, 2.0
    %v497 = vmul.f32 %v433, 2.0
    %v498 = vmul.f32 %v434, 2.0
    %v499 = vsub.f32 %v435, 1.0
    %v500 = vsub.f32 %v436, 1.0
    %v501 = vsub.f32 %v437, 1.0
    %v502 = vsub.f32 %v438, 1.0
    %v503 = vsub.f32 %v439, 1.0
    %v504 = vsub.f32 %v440, 1.0
    %v505 = vsub.f32 %v441, 1.0
    %v506 = vsub.f32 %v442, 1.0
    %v507 = vsub.f32 %v443, 1.0
    %v508 = vsub.f32 %v444, 1.0
    %v509 = vsub.f32 %v445, 1.0
    %v510 = vsub.f32 %v446, 1.0
    %v511 = vsub.f32 %v447, 1.0
    %v512 = vsub.f32 %v448, 1.0
    %v513 = vsub.f32 %v449, 1.0
    %v514 = vsub.f32 %v450, 1.0
    %v515 = vsub.f32 %v451, 1.0
    %v516 = vsub.f32 %v452, 1.0
    %v517 = vsub.f32 %v453, 1.0
    %v518 = vsub.f32 %v454, 1.0
    %v519 = vsub.f32 %v455, 1.0
    %v520 = vsub.f32 %v456, 1.0
    %v521 = vsub.f32 %v457, 1.0
    %v522 = vsub.f32 %v458, 1.0
    %v523 = vsub.f32 %v459, 1.0
    %v524 = vsub.f32 %v460, 1.0
    %v525 = vsub.f32 %v461, 1.0
    %v526 = vsub.f32 %v462, 1.0
    %v527 = vsub.f32 %v463, 1.0
    %v528 = vsub.f32 %v464, 1.0
    %v529 = vsub.f32 %v465, 1.0
    %v530 = vsub.f32 %v466, 1.0
    %v531 = vsub.f32 %v467, 1.0
    %v532 = vsub.f32 %v468, 1.0
    %v533 = vsub.f32 %v469, 1.0
    %v534 = vsub.f32 %v470, 1.0
    %v535 = vsub.f32 %v471, 1.0
    %v536 = vsub.f32 %v472, 1.0
    %v537 = vsub.f32 %v473, 1.0
    %v538 = vsub.f32 %v474, 1.0
    %v539 = vsub.f32 %v475, 1.0
    %v540 = vsub.f32 %v476, 1.0
    %v541 = vsub.f32 %v477, 1.0
    %v542 = vsub.f32 %v478, 1.0
    %v543 = vsub.f32 %v479, 1.0
    %v544 = vsub.f32 %v480, 1.0
    %v545 = vsub.f32 %v481, 1.0
    %v546 = vsub.f32 %v482, 1.0
    %v547 = vsub.f32 %v483, 1.0
    %v548 = vsub.f32 %v484, 1.0
    %v549 = vsub.f32 %v485, 1.0
    %v550 = vsub.f32 %v486, 1.0
    %v551 = vsub.f32 %v487, 1.0
    %v552 = vsub.f32 %v488, 1.0
    %v553 = vsub.f32 %v489, 1.0
    %v554 = vsub.f32 %v490, 1.0
    %v555 = vsub.f32 %v491, 1.0
    %v556 = vsub.f32 %v492, 1.0
    %v557 = vsub.f32 %v493, 1.0
    %v558 = vsub.f32 %v494, 1.0
    %v559 = vsub.f32 %v495, 1.0
    %v560 = vsub.f32 %v496, 1.0
    %v561 = vsub.f32 %v497, 1.0
    %v562 = vsub.f32 %v498, 1.0
    %v563 = vadd.f32 %v499, 3.0
    %v564 = vadd.f32 %v500, 3.0
    %v565 = vadd.f32 %v501, 3.0
    %v566 = vadd.f32 %v502, 3.0
    %v567 = vadd.f32 %v503, 3.0
    %v568 = vadd.f32 %v504, 3.0
    %v569 = vadd.f32 %v505, 3.0
    %v570 = vadd.f32 %v506, 3.0
    %v571 = vadd.f32 %v507, 3.0
    %v572 = vadd.f32 %v508, 3.0
    %v573 = vadd.f32 %v509, 3.0
    %v574 = vadd.f32 %v510, 3.0
    %v575 = vadd.f32 %v511, 3.0
    %v576 = vadd.f32 %v512, 3.0
    %v577 = vadd.f32 %v513, 3.0
    %v578 = vadd.f32 %v514, 3.0
    %v579 = vadd.f32 %v515, 3.0
    %v580 = vadd.f32 %v516, 3.0
    %v581 = vadd.f32 %v517, 3.0
    %v582 = vadd.f32 %v518, 3.0
    %v583 = vadd.f32 %v519, 3.0
    %v584 = vadd.f32 %v520, 3.0
    %v585 = vadd.f32 %v521, 3.0
    %v586 = vadd.f32 %v522, 3.0
    %v587 = vadd.f32 %v523, 3.0
    %v588 = vadd.f32 %v524, 3.0
    %v589 = vadd.f32 %v525, 3.0
    %v590 = vadd.f32 %v526, 3.0
    %v591 = vadd.f32 %v527, 3.0
    %v592 = vadd.f32 %v528, 3.0
    %v593 = vadd.f32 %v529, 3.0
    %v594 = vadd.f32 %v530, 3.0
    %v595 = vadd.f32 %v531, 3.0
    %v596 = vadd.f32 %v532, 3.0
    %v597 = vadd.f32 %v533, 3.0
    %v598 = vadd.f32 %v534, 3.0
    %v599 = vadd.f32 %v535, 3.0
    %v600 = vadd.f32 %v536, 3.0
    %v601 = vadd.f32 %v537, 3.0
    %v602 = vadd.f32 %v538, 3.0
    %v603 = vadd.f32 %v539, 3.0
    %v604 = vadd.f32 %v540, 3.0
    %v605 = vadd.f32 %v541, 3.0
    %v606 = vadd.f32 %v542, 3.0
    %v607 = vadd.f32 %v543, 3.0
    %v608 = vadd.f32 %v544, 3.0
    %v609 = vadd.f32 %v545, 3.0
    %v610 = vadd.f32 %v546, 3.0
    %v611 = vadd.f32 %v547, 3.0
    %v612 = vadd.f32 %v548, 3.0
    %v613 = vadd.f32 %v549, 3.0
    %v614 = vadd.f32 %v550, 3.0
    %v615 = vadd.f32 %v551, 3.0
    %v616 = vadd.f32 %v552, 3.0
    %v617 = vadd.f32 %v553, 3.0
    %v618 = vadd.f32 %v554, 3.0
    %v619 = vadd.f32 %v555, 3.0
    %v620 = vadd.f32 %v556, 3.0
    %v621 = vadd.f32 %v557, 3.0
    %v622 = vadd.f32 %v558, 3.0
    %v623 = vadd.f32 %v559, 3.0
    %v624 = vadd.f32 %v560, 3.0
    %v625 = vadd.f32 %v561, 3.0
    %v626 = vadd.f32 %v562, 3.0
    %v627 = vmax.f32 %v563, 0.0
    %v628 = vmax.f32 %v564, 0.0
    %v629 = vmax.f32 %v565, 0.0
    %v630 = vmax.f32 %v566, 0.0
    %v631 = vmax.f32 %v567, 0.0
    %v632 = vmax.f32 %v568, 0.0
    %v633 = vmax.f32 %v569, 0.0
    %v634 = vmax.f32 %v570, 0.0
    %v635 = vmax.f32 %v571, 0.0
    %v636 = vmax.f32 %v572, 0.0
    %v637 = vmax.f32 %v573, 0.0
    %v638 = vmax.f32 %v574, 0.0
    %v639 = vmax.f32 %v575, 0.0
    %v640 = vmax.f32 %v576, 0.0
    %v641 = vmax.f32 %v577, 0.0
    %v642 = vmax.f32 %v578, 0.0
    %v643 = vmax.f32 %v579, 0.0
    %v644 = vmax.f32 %v580, 0.0
    %v645 = vmax.f32 %v581, 0.0
    %v646 = vmax.f32 %v582, 0.0
    %v647 = vmax.f32 %v583, 0.0
    %v648 = vmax.f32 %v584, 0.0
    %v649 = vmax.f32 %v585, 0.0
    %v650 = vmax.f32 %v586, 0.0
    %v651 = vmax.f32 %v587, 0.0
    %v652 = vmax.f32 %v588, 0.0
    %v653 = vmax.f32 %v589, 0.0
    %v654 = vmax.f32 %v590, 0.0
    %v655 = vmax.f32 %v591, 0.0
    %v656 = vmax.f32 %v592, 0.0
    %v657 = vmax.f32 %v593, 0.0
    %v658 = vmax.f32 %v594, 0.0
    %v659 = vmax.f32 %v595, 0.0
    %v660 = vmax.f32 %v596, 0.0
    %v661 = vmax.f32 %v597, 0.0
    %v662 = vmax.f32 %v598, 0.0
    %v663 = vmax.f32 %v599, 0.0
    %v664 = vmax.f32 %v600, 0.0
    %v665 = vmax.f32 %v601, 0.0
    %v666 = vmax.f32 %v602, 0.0
    %v667 = vmax.f32 %v603, 0.0
    %v668 = vmax.f32 %v604, 0.0
    %v669 = vmax.f32 %v605, 0.0
    %v670 = vmax.f32 %v606, 0.0
    %v671 = vmax.f32 %v607, 0.0
    %v672 = vmax.f32 %v608, 0.0
    %v673 = vmax.f32 %v609, 0.0
    %v674 = vmax.f32 %v610, 0.0
    %v675 = vmax.f32 %v611, 0.0
    %v676 = vmax.f32 %v612, 0.0
    %v677 = vmax.f32 %v613, 0.0
    %v678 = vmax.f32 %v614, 0.0
    %v679 = vmax.f32 %v615, 0.0
    %v680 = vmax.f32 %v616, 0.0
    %v681 = vmax.f32 %v617, 0.0
    %v682 = vmax.f32 %v618, 0.0
    %v683 = vmax.f32 %v619, 0.0
    %v684 = vmax.f32 %v620, 0.0
    %v685 = vmax.f32 %v621, 0.0
    %v686 = vmax.f32 %v622, 0.0
    %v687 = vmax.f32 %v623, 0.0
    %v688 = vmax.f32 %v624, 0.0
    %v689 = vmax.f32 %v625, 0.0
    %v690 = vmax.f32 %v626, 0.0
    %v691 = vmin.f32 %v627, 6.0
    %v692 = vmin.f32 %v628, 6.0
    %v693 = vmin.f32 %v629, 6.0
    %v694 = vmin.f32 %v630, 6.0
    %v695 = vmin.f32 %v631, 6.0
    %v696 = vmin.f32 %v632, 6.0
    %v697 = vmin.f32 %v633, 6.0
    %v698 = vmin.f32 %v634, 6.0
    %v699 = vmin.f32 %v635, 6.0
    %v700 = vmin.f32 %v636, 6.0
    %v701 = vmin.f32 %v637, 6.0
    %v702 = vmin.f32 %v638, 6.0
    %v703 = vmin.f32 %v639, 6.0
    %v704 = vmin.f32 %v640, 6.0
    %v705 = vmin.f32 %v641, 6.0
    %v706 = vmin.f32 %v642, 6.0
    %v707 = vmin.f32 %v643, 6.0
    %v708 = vmin.f32 %v644, 6.0
    %v709 = vmin.f32 %v645, 6.0
    %v710 = vmin.f32 %v646, 6.0
    %v711 = vmin.f32 %v647, 6.0
    %v712 = vmin.f32 %v648, 6.0
    %v713 = vmin.f32 %v649, 6.0
    %v714 = vmin.f32 %v650, 6.0
    %v715 = vmin.f32 %v651, 6.0
    %v716 = vmin.f32 %v652, 6.0
    %v717 = vmin.f32 %v653, 6.0
    %v718 = vmin.f32 %v654, 6.0
    %v719 = vmin.f32 %v655, 6.0
    %v720 = vmin.f32 %v656, 6.0
    %v721 = vmin.f32 %v657, 6.0
    %v722 = vmin.f32 %v658, 6.0
    %v723 = vmin.f32 %v659, 6.0
    %v724 = vmin.f32 %v660, 6.0
    %v725 = vmin.f32 %v661, 6.0
    %v726 = vmin.f32 %v662, 6.0
    %v727 = vmin.f32 %v663, 6.0
    %v728 = vmin.f32 %v664, 6.0
    %v729 = vmin.f32 %v665, 6.0
    %v730 = vmin.f32 %v666, 6.0
    %v731 = vmin.f32 %v667, 6.0
    %v732 = vmin.f32 %v668, 6.0
    %v733 = vmin.f32 %v669, 6.0
    %v734 = vmin.f32 %v670, 6.0
    %v735 = vmin.f32 %v671, 6.0
    %v736 = vmin.f32 %v672, 6.0
    %v737 = vmin.f32 %v673, 6.0
    %v738 = vmin.f32 %v674, 6.0
    %v739 = vmin.f32 %v675, 6.0
    %v740 = vmin.f32 %v676, 6.0
    %v741 = vmin.f32 %v677, 6.0
    %v742 = vmin.f32 %v678, 6.0
    %v743 = vmin.f32 %v679, 6.0
    %v744 = vmin.f32 %v680, 6.0
    %v745 = vmin.f32 %v681, 6.0
    %v746 = vmin.f32 %v682, 6.0
    %v747 = vmin.f32 %v683, 6.0
    %v748 = vmin.f32 %v684, 6.0
    %v749 = vmin.f32 %v685, 6.0
    %v750 = vmin.f32 %v686, 6.0
    %v751 = vmin.f32 %v687, 6.0
    %v752 = vmin.f32 %v688, 6.0
    %v753 = vmin.f32 %v689, 6.0
    %v754 = vmin.f32 %v690, 6.0
    %v755 = vmul.f32 %v691, 0.16666667
    %v756 = vmul.f32 %v692, 0.16666667
    %v757 = vmul.f32 %v693, 0.16666667
    %v758 = vmul.f32 %v694, 0.16666667
    %v759 = vmul.f32 %v695, 0.16666667
    %v760 = vmul.f32 %v696, 0.16666667
    %v761 = vmul.f32 %v697, 0.16666667
    %v762 = vmul.f32 %v698, 0.16666667
    %v763 = vmul.f32 %v699, 0.16666667
    %v764 = vmul.f32 %v700, 0.16666667
    %v765 = vmul.f32 %v701, 0.16666667
    %v766 = vmul.f32 %v702, 0.16666667
    %v767 = vmul.f32 %v703, 0.16666667
    %v768 = vmul.f32 %v704, 0.16666667
    %v769 = vmul.f32 %v705, 0.16666667
    %v770 = vmul.f32 %v706, 0.16666667
    %v771 = vmul.f32 %v707, 0.16666667
    %v772 = vmul.f32 %v708, 0.16666667
    %v773 = vmul.f32 %v709, 0.16666667
    %v774 = vmul.f32 %v710, 0.16666667
    %v775 = vmul.f32 %v711, 0.16666667
    %v776 = vmul.f32 %v712, 0.16666667
    %v777 = vmul.f32 %v713, 0.16666667
    %v778 = vmul.f32 %v714, 0.16666667
    %v779 = vmul.f32 %v715, 0.16666667
    %v780 = vmul.f32 %v716, 0.16666667
    %v781 = vmul.f32 %v717, 0.16666667
    %v782 = vmul.f32 %v718, 0.16666667
    %v783 = vmul.f32 %v719, 0.16666667
    %v784 = vmul.f32 %v720, 0.16666667
    %v785 = vmul.f32 %v721, 0.16666667
    %v786 = vmul.f32 %v722, 0.16666667
    %v787 = vmul.f32 %v723, 0.16666667
    %v788 = vmul.f32 %v724, 0.16666667
    %v789 = vmul.f32 %v725, 0.16666667
    %v790 = vmul.f32 %v726, 0.16666667
    %v791 = vmul.f32 %v727, 0.16666667
    %v792 = vmul.f32 %v728, 0.16666667
    %v793 = vmul.f32 %v729, 0.16666667
    %v794 = vmul.f32 %v730, 0.16666667
    %v795 = vmul.f32 %v731, 0.16666667
    %v796 = vmul.f32 %v732, 0.16666667
    %v797 = vmul.f32 %v733, 0.16666667
    %v798 = vmul.f32 %v734, 0.16666667
    %v799 = vmul.f32 %v735, 0.16666667
    %v800 = vmul.f32 %v736, 0.16666667
    %v801 = vmul.f32 %v737, 0.16666667
    %v802 = vmul.f32 %v738, 0.16666667
    %v803 = vmul.f32 %v739, 0.16666667
    %v804 = vmul.f32 %v740, 0.16666667
    %v805 = vmul.f32 %v741, 0.16666667
    %v806 = vmul.f32 %v742, 0.16666667
    %v807 = vmul.f32 %v743, 0.16666667
    %v808 = vmul.f32 %v744, 0.16666667
    %v809 = vmul.f32 %v745, 0.16666667
    %v810 = vmul.f32 %v746, 0.16666667
    %v811 = vmul.f32 %v747, 0.16666667
    %v812 = vmul.f32 %v748, 0.16666667
    %v813 = vmul.f32 %v749, 0.16666667
    %v814 = vmul.f32 %v750, 0.16666667
    %v815 = vmul.f32 %v751, 0.16666667
    %v816 = vmul.f32 %v752, 0.16666667
    %v817 = vmul.f32 %v753, 0.16666667
    %v818 = vmul.f32 %v754, 0.16666667
    %v819 = vadd.f32 %v755, 3.0
    %v820 = vadd.f32 %v756, 3.0
    %v821 = vadd.f32 %v757, 3.0
    %v822 = vadd.f32 %v758, 3.0
    %v823 = vadd.f32 %v759, 3.0
    %v824 = vadd.f32 %v760, 3.0
    %v825 = vadd.f32 %v761, 3.0
    %v826 = vadd.f32 %v762, 3.0
    %v827 = vadd.f32 %v763, 3.0
    %v828 = vadd.f32 %v764, 3.0
    %v829 = vadd.f32 %v765, 3.0
    %v830 = vadd.f32 %v766, 3.0
    %v831 = vadd.f32 %v767, 3.0
    %v832 = vadd.f32 %v768, 3.0
    %v833 = vadd.f32 %v769, 3.0
    %v834 = vadd.f32 %v770, 3.0
    %v835 = vadd.f32 %v771, 3.0
    %v836 = vadd.f32 %v772, 3.0
    %v837 = vadd.f32 %v773, 3.0
    %v838 = vadd.f32 %v774, 3.0
    %v839 = vadd.f32 %v775, 3.0
    %v840 = vadd.f32 %v776, 3.0
    %v841 = vadd.f32 %v777, 3.0
    %v842 = vadd.f32 %v778, 3.0
    %v843 = vadd.f32 %v779, 3.0
    %v844 = vadd.f32 %v780, 3.0
    %v845 = vadd.f32 %v781, 3.0
    %v846 = vadd.f32 %v782, 3.0
    %v847 = vadd.f32 %v783, 3.0
    %v848 = vadd.f32 %v784, 3.0
    %v849 = vadd.f32 %v785, 3.0
    %v850 = vadd.f32 %v786, 3.0
    %v851 = vadd.f32 %v787, 3.0
    %v852 = vadd.f32 %v788, 3.0
    %v853 = vadd.f32 %v789, 3.0
    %v854 = vadd.f32 %v790, 3.0
    %v855 = vadd.f32 %v791, 3.0
    %v856 = vadd.f32 %v792, 3.0
    %v857 = vadd.f32 %v793, 3.0
    %v858 = vadd.f32 %v794, 3.0
    %v859 = vadd.f32 %v795, 3.0
    %v860 = vadd.f32 %v796, 3.0
    %v861 = vadd.f32 %v797, 3.0
    %v862 = vadd.f32 %v798, 3.0
    %v863 = vadd.f32 %v799, 3.0
    %v864 = vadd.f32 %v800, 3.0
    %v865 = vadd.f32 %v801, 3.0
    %v866 = vadd.f32 %v802, 3.0
    %v867 = vadd.f32 %v803, 3.0
    %v868 = vadd.f32 %v804, 3.0
    %v869 = vadd.f32 %v805, 3.0
    %v870 = vadd.f32 %v806, 3.0
    %v871 = vadd.f32 %v807, 3.0
    %v872 = vadd.f32 %v808, 3.0
    %v873 = vadd.f32 %v809, 3.0
    %v874 = vadd.f32 %v810, 3.0
    %v875 = vadd.f32 %v811, 3.0
    %v876 = vadd.f32 %v812, 3.0
    %v877 = vadd.f32 %v813, 3.0
    %v878 = vadd.f32 %v814, 3.0
    %v879 = vadd.f32 %v815, 3.0
    %v880 = vadd.f32 %v816, 3.0
    %v881 = vadd.f32 %v817, 3.0
    %v882 = vadd.f32 %v818, 3.0
    %v883 = vmax.f32 %v819, 0.0
    %v884 = vmax.f32 %v820, 0.0
    %v885 = vmax.f32 %v821, 0.0
    %v886 = vmax.f32 %v822, 0.0
    %v887 = vmax.f32 %v823, 0.0
    %v888 = vmax.f32 %v824, 0.0
    %v889 = vmax.f32 %v825, 0.0
    %v890 = vmax.f32 %v826, 0.0
    %v891 = vmax.f32 %v827, 0.0
    %v892 = vmax.f32 %v828, 0.0
    %v893 = vmax.f32 %v829, 0.0
    %v894 = vmax.f32 %v830, 0.0
    %v895 = vmax.f32 %v831, 0.0
    %v896 = vmax.f32 %v832, 0.0
    %v897 = vmax.f32 %v833, 0.0
    %v898 = vmax.f32 %v834, 0.0
    %v899 = vmax.f32 %v835, 0.0
    %v900 = vmax.f32 %v836, 0.0
    %v901 = vmax.f32 %v837, 0.0
    %v902 = vmax.f32 %v838, 0.0
    %v903 = vmax.f32 %v839, 0.0
    %v904 = vmax.f32 %v840, 0.0
    %v905 = vmax.f32 %v841, 0.0
    %v906 = vmax.f32 %v842, 0.0
    %v907 = vmax.f32 %v843, 0.0
    %v908 = vmax.f32 %v844, 0.0
    %v909 = vmax.f32 %v845, 0.0
    %v910 = vmax.f32 %v846, 0.0
    %v911 = vmax.f32 %v847, 0.0
    %v912 = vmax.f32 %v848, 0.0
    %v913 = vmax.f32 %v849, 0.0
    %v914 = vmax.f32 %v850, 0.0
    %v915 = vmax.f32 %v851, 0.0
    %v916 = vmax.f32 %v852, 0.0
    %v917 = vmax.f32 %v853, 0.0
    %v918 = vmax.f32 %v854, 0.0
    %v919 = vmax.f32 %v855, 0.0
    %v920 = vmax.f32 %v856, 0.0
    %v921 = vmax.f32 %v857, 0.0
    %v922 = vmax.f32 %v858, 0.0
    %v923 = vmax.f32 %v859, 0.0
    %v924 = vmax.f32 %v860, 0.0
    %v925 = vmax.f32 %v861, 0.0
    %v926 = vmax.f32 %v862, 0.0
    %v927 = vmax.f32 %v863, 0.0
    %v928 = vmax.f32 %v864, 0.0
    %v929 = vmax.f32 %v865, 0.0
    %v930 = vmax.f32 %v866, 0.0
    %v931 = vmax.f32 %v867, 0.0
    %v932 = vmax.f32 %v868, 0.0
    %v933 = vmax.f32 %v869, 0.0
    %v934 = vmax.f32 %v870, 0.0
    %v935 = vmax.f32 %v871, 0.0
    %v936 = vmax.f32 %v872, 0.0
    %v937 = vmax.f32 %v873, 0.0
    %v938 = vmax.f32 %v874, 0.0
    %v939 = vmax.f32 %v875, 0.0
    %v940 = vmax.f32 %v876, 0.0
    %v941 = vmax.f32 %v877, 0.0
    %v942 = vmax.f32 %v878, 0.0
    %v943 = vmax.f32 %v879, 0.0
    %v944 = vmax.f32 %v880, 0.0
    %v945 = vmax.f32 %v881, 0.0
    %v946 = vmax.f32 %v882, 0.0
    %v947 = vmin.f32 %v883, 6.0
    %v948 = vmin.f32 %v884, 6.0
    %v949 = vmin.f32 %v885, 6.0
    %v950 = vmin.f32 %v886, 6.0
    %v951 = vmin.f32 %v887, 6.0
    %v952 = vmin.f32 %v888, 6.0
    %v953 = vmin.f32 %v889, 6.0
    %v954 = vmin.f32 %v890, 6.0
    %v955 = vmin.f32 %v891, 6.0
    %v956 = vmin.f32 %v892, 6.0
    %v957 = vmin.f32 %v893, 6.0
    %v958 = vmin.f32 %v894, 6.0
    %v959 = vmin.f32 %v895, 6.0
    %v960 = vmin.f32 %v896, 6.0
    %v961 = vmin.f32 %v897, 6.0
    %v962 = vmin.f32 %v898, 6.0
    %v963 = vmin.f32 %v899, 6.0
    %v964 = vmin.f32 %v900, 6.0
    %v965 = vmin.f32 %v901, 6.0
    %v966 = vmin.f32 %v902, 6.0
    %v967 = vmin.f32 %v903, 6.0
    %v968 = vmin.f32 %v904, 6.0
    %v969 = vmin.f32 %v905, 6.0
    %v970 = vmin.f32 %v906, 6.0
    %v971 = vmin.f32 %v907, 6.0
    %v972 = vmin.f32 %v908, 6.0
    %v973 = vmin.f32 %v909, 6.0
    %v974 = vmin.f32 %v910, 6.0
    %v975 = vmin.f32 %v911, 6.0
    %v976 = vmin.f32 %v912, 6.0
    %v977 = vmin.f32 %v913, 6.0
    %v978 = vmin.f32 %v914, 6.0
    %v979 = vmin.f32 %v915, 6.0
    %v980 = vmin.f32 %v916, 6.0
    %v981 = vmin.f32 %v917, 6.0
    %v982 = vmin.f32 %v918, 6.0
    %v983 = vmin.f32 %v919, 6.0
    %v984 = vmin.f32 %v920, 6.0
    %v985 = vmin.f32 %v921, 6.0
    %v986 = vmin.f32 %v922, 6.0
    %v987 = vmin.f32 %v923, 6.0
    %v988 = vmin.f32 %v924, 6.0
    %v989 = vmin.f32 %v925, 6.0
    %v990 = vmin.f32 %v926, 6.0
    %v991 = vmin.f32 %v927, 6.0
    %v992 = vmin.f32 %v928, 6.0
    %v993 = vmin.f32 %v929, 6.0
    %v994 = vmin.f32 %v930, 6.0
    %v995 = vmin.f32 %v931, 6.0
    %v996 = vmin.f32 %v932, 6.0
    %v997 = vmin.f32 %v933, 6.0
    %v998 = vmin.f32 %v934, 6.0
    %v999 = vmin.f32 %v935, 6.0
    %v1000 = vmin.f32 %v936, 6.0
    %v1001 = vmin.f32 %v937, 6.0
    %v1002 = vmin.f32 %v938, 6.0
    %v1003 = vmin.f32 %v939, 6.0
    %v1004 = vmin.f32 %v940, 6.0
    %v1005 = vmin.f32 %v941, 6.0
    %v1006 = vmin.f32 %v942, 6.0
    %v1007 = vmin.f32 %v943, 6.0
    %v1008 = vmin.f32 %v944, 6.0
    %v1009 = vmin.f32 %v945, 6.0
    %v1010 = vmin.f32 %v946, 6.0
    %v1011 = vmul.f32 %v947, 0.16666667
    %v1012 = vmul.f32 %v948, 0.16666667
    %v1013 = vmul.f32 %v949, 0.16666667
    %v1014 = vmul.f32 %v950, 0.16666667
    %v1015 = vmul.f32 %v951, 0.16666667
    %v1016 = vmul.f32 %v952, 0.16666667
    %v1017 = vmul.f32 %v953, 0.16666667
    %v1018 = vmul.f32 %v954, 0.16666667
    %v1019 = vmul.f32 %v955, 0.16666667
    %v1020 = vmul.f32 %v956, 0.16666667
    %v1021 = vmul.f32 %v957, 0.16666667
    %v1022 = vmul.f32 %v958, 0.16666667
    %v1023 = vmul.f32 %v959, 0.16666667
    %v1024 = vmul.f32 %v960, 0.16666667
    %v1025 = vmul.f32 %v961, 0.16666667
    %v1026 = vmul.f32 %v962, 0.16666667
    %v1027 = vmul.f32 %v963, 0.16666667
    %v1028 = vmul.f32 %v964, 0.16666667
    %v1029 = vmul.f32 %v965, 0.16666667
    %v1030 = vmul.f32 %v966, 0.16666667
    %v1031 = vmul.f32 %v967, 0.16666667
    %v1032 = vmul.f32 %v968, 0.16666667
    %v1033 = vmul.f32 %v969, 0.16666667
    %v1034 = vmul.f32 %v970, 0.16666667
    %v1035 = vmul.f32 %v971, 0.16666667
    %v1036 = vmul.f32 %v972, 0.16666667
    %v1037 = vmul.f32 %v973, 0.16666667
    %v1038 = vmul.f32 %v974, 0.16666667
    %v1039 = vmul.f32 %v975, 0.16666667
    %v1040 = vmul.f32 %v976, 0.16666667
    %v1041 = vmul.f32 %v977, 0.16666667
    %v1042 = vmul.f32 %v978, 0.16666667
    %v1043 = vmul.f32 %v979, 0.16666667
    %v1044 = vmul.f32 %v980, 0.16666667
    %v1045 = vmul.f32 %v981, 0.16666667
    %v1046 = vmul.f32 %v982, 0.16666667
    %v1047 = vmul.f32 %v983, 0.16666667
    %v1048 = vmul.f32 %v984, 0.16666667
    %v1049 = vmul.f32 %v985, 0.16666667
    %v1050 = vmul.f32 %v986, 0.16666667
    %v1051 = vmul.f32 %v987, 0.16666667
    %v1052 = vmul.f32 %v988, 0.16666667
    %v1053 = vmul.f32 %v989, 0.16666667
    %v1054 = vmul.f32 %v990, 0.16666667
    %v1055 = vmul.f32 %v991, 0.16666667
    %v1056 = vmul.f32 %v992, 0.16666667
    %v1057 = vmul.f32 %v993, 0.16666667
    %v1058 = vmul.f32 %v994, 0.16666667
    %v1059 = vmul.f32 %v995, 0.16666667
    %v1060 = vmul.f32 %v996, 0.16666667
    %v1061 = vmul.f32 %v997, 0.16666667
    %v1062 = vmul.f32 %v998, 0.16666667
    %v1063 = vmul.f32 %v999, 0.16666667
    %v1064 = vmul.f32 %v1000, 0.16666667
    %v1065 = vmul.f32 %v1001, 0.16666667
    %v1066 = vmul.f32 %v1002, 0.16666667
    %v1067 = vmul.f32 %v1003, 0.16666667
    %v1068 = vmul.f32 %v1004, 0.16666667
    %v1069 = vmul.f32 %v1005, 0.16666667
    %v1070 = vmul.f32 %v1006, 0.16666667
    %v1071 = vmul.f32 %v1007, 0.16666667
    %v1072 = vmul.f32 %v1008, 0.16666667
    %v1073 = vmul.f32 %v1009, 0.16666667
    %v1074 = vmul.f32 %v1010, 0.16666667
    %vm1075 = vcmask 130048
    %1076 = vst.msk [vmem:[#allocation10] sm:$0xff] %vm1075, %v1011
    %1077 = vst.msk [vmem:[#allocation10 + $0x8] sm:$0xff] %vm1075, %v1012
    %1078 = vst.msk [vmem:[#allocation10 + $0x10] sm:$0xff] %vm1075, %v1013
    %1079 = vst.msk [vmem:[#allocation10 + $0x18] sm:$0xff] %vm1075, %v1014
    %1080 = vst.msk [vmem:[#allocation10 + $0x20] sm:$0xff] %vm1075, %v1015
    %1081 = vst.msk [vmem:[#allocation10 + $0x28] sm:$0xff] %vm1075, %v1016
    %1082 = vst.msk [vmem:[#allocation10 + $0x30] sm:$0xff] %vm1075, %v1017
    %1083 = vst.msk [vmem:[#allocation10 + $0x38] sm:$0xff] %vm1075, %v1018
    %1084 = vst.msk [vmem:[#allocation10 + $0x40] sm:$0xff] %vm1075, %v1019
    %1085 = vst.msk [vmem:[#allocation10 + $0x48] sm:$0xff] %vm1075, %v1020
    %1086 = vst.msk [vmem:[#allocation10 + $0x50] sm:$0xff] %vm1075, %v1021
    %1087 = vst.msk [vmem:[#allocation10 + $0x58] sm:$0xff] %vm1075, %v1022
    %1088 = vst.msk [vmem:[#allocation10 + $0x60] sm:$0xff] %vm1075, %v1023
    %1089 = vst.msk [vmem:[#allocation10 + $0x68] sm:$0xff] %vm1075, %v1024
    %1090 = vst.msk [vmem:[#allocation10 + $0x70] sm:$0xff] %vm1075, %v1025
    %1091 = vst.msk [vmem:[#allocation10 + $0x78] sm:$0xff] %vm1075, %v1026
    %1092 = vst.msk [vmem:[#allocation10 + $0x80] sm:$0xff] %vm1075, %v1027
    %1093 = vst.msk [vmem:[#allocation10 + $0x88] sm:$0xff] %vm1075, %v1028
    %1094 = vst.msk [vmem:[#allocation10 + $0x90] sm:$0xff] %vm1075, %v1029
    %1095 = vst.msk [vmem:[#allocation10 + $0x98] sm:$0xff] %vm1075, %v1030
    %1096 = vst.msk [vmem:[#allocation10 + $0xa0] sm:$0xff] %vm1075, %v1031
    %1097 = vst.msk [vmem:[#allocation10 + $0xa8] sm:$0xff] %vm1075, %v1032
    %1098 = vst.msk [vmem:[#allocation10 + $0xb0] sm:$0xff] %vm1075, %v1033
    %1099 = vst.msk [vmem:[#allocation10 + $0xb8] sm:$0xff] %vm1075, %v1034
    %1100 = vst.msk [vmem:[#allocation10 + $0xc0] sm:$0xff] %vm1075, %v1035
    %1101 = vst.msk [vmem:[#allocation10 + $0xc8] sm:$0xff] %vm1075, %v1036
    %1102 = vst.msk [vmem:[#allocation10 + $0xd0] sm:$0xff] %vm1075, %v1037
    %1103 = vst.msk [vmem:[#allocation10 + $0xd8] sm:$0xff] %vm1075, %v1038
    %1104 = vst.msk [vmem:[#allocation10 + $0xe0] sm:$0xff] %vm1075, %v1039
    %1105 = vst.msk [vmem:[#allocation10 + $0xe8] sm:$0xff] %vm1075, %v1040
    %1106 = vst.msk [vmem:[#allocation10 + $0xf0] sm:$0xff] %vm1075, %v1041
    %1107 = vst.msk [vmem:[#allocation10 + $0xf8] sm:$0xff] %vm1075, %v1042
    %1108 = vst.msk [vmem:[#allocation10 + $0x100] sm:$0xff] %vm1075, %v1043
    %1109 = vst.msk [vmem:[#allocation10 + $0x108] sm:$0xff] %vm1075, %v1044
    %1110 = vst.msk [vmem:[#allocation10 + $0x110] sm:$0xff] %vm1075, %v1045
    %1111 = vst.msk [vmem:[#allocation10 + $0x118] sm:$0xff] %vm1075, %v1046
    %1112 = vst.msk [vmem:[#allocation10 + $0x120] sm:$0xff] %vm1075, %v1047
    %1113 = vst.msk [vmem:[#allocation10 + $0x128] sm:$0xff] %vm1075, %v1048
    %1114 = vst.msk [vmem:[#allocation10 + $0x130] sm:$0xff] %vm1075, %v1049
    %1115 = vst.msk [vmem:[#allocation10 + $0x138] sm:$0xff] %vm1075, %v1050
    %1116 = vst.msk [vmem:[#allocation10 + $0x140] sm:$0xff] %vm1075, %v1051
    %1117 = vst.msk [vmem:[#allocation10 + $0x148] sm:$0xff] %vm1075, %v1052
    %1118 = vst.msk [vmem:[#allocation10 + $0x150] sm:$0xff] %vm1075, %v1053
    %1119 = vst.msk [vmem:[#allocation10 + $0x158] sm:$0xff] %vm1075, %v1054
    %1120 = vst.msk [vmem:[#allocation10 + $0x160] sm:$0xff] %vm1075, %v1055
    %1121 = vst.msk [vmem:[#allocation10 + $0x168] sm:$0xff] %vm1075, %v1056
    %1122 = vst.msk [vmem:[#allocation10 + $0x170] sm:$0xff] %vm1075, %v1057
    %1123 = vst.msk [vmem:[#allocation10 + $0x178] sm:$0xff] %vm1075, %v1058
    %1124 = vst.msk [vmem:[#allocation10 + $0x180] sm:$0xff] %vm1075, %v1059
    %1125 = vst.msk [vmem:[#allocation10 + $0x188] sm:$0xff] %vm1075, %v1060
    %1126 = vst.msk [vmem:[#allocation10 + $0x190] sm:$0xff] %vm1075, %v1061
    %1127 = vst.msk [vmem:[#allocation10 + $0x198] sm:$0xff] %vm1075, %v1062
    %1128 = vst.msk [vmem:[#allocation10 + $0x1a0] sm:$0xff] %vm1075, %v1063
    %1129 = vst.msk [vmem:[#allocation10 + $0x1a8] sm:$0xff] %vm1075, %v1064
    %1130 = vst.msk [vmem:[#allocation10 + $0x1b0] sm:$0xff] %vm1075, %v1065
    %1131 = vst.msk [vmem:[#allocation10 + $0x1b8] sm:$0xff] %vm1075, %v1066
    %1132 = vst.msk [vmem:[#allocation10 + $0x1c0] sm:$0xff] %vm1075, %v1067
    %1133 = vst.msk [vmem:[#allocation10 + $0x1c8] sm:$0xff] %vm1075, %v1068
    %1134 = vst.msk [vmem:[#allocation10 + $0x1d0] sm:$0xff] %vm1075, %v1069
    %1135 = vst.msk [vmem:[#allocation10 + $0x1d8] sm:$0xff] %vm1075, %v1070
    %1136 = vst.msk [vmem:[#allocation10 + $0x1e0] sm:$0xff] %vm1075, %v1071
    %1137 = vst.msk [vmem:[#allocation10 + $0x1e8] sm:$0xff] %vm1075, %v1072
    %1138 = vst.msk [vmem:[#allocation10 + $0x1f0] sm:$0xff] %vm1075, %v1073
    %1139 = vst.msk [vmem:[#allocation10 + $0x1f8] sm:$0xff] %vm1075, %v1074
    // Predicated region
    $region26: #{model_forward.1} parent=1 // pred_check
      _
    $region27: #{model_forward.1} parent=1 // pred_check_branch
      %1141 = sbr.rel (0) target = $region29
    $region28: #{model_forward.1} parent=1 // pred_region
      %1143 = vsyncadd [#allocation4], 0
      %s1145 = sshll.u32 [#allocation7], 4
      %s1146 = int_to_ptr.vmem [resolvable:$true] %s1145
      %s1147 = sshll.u32 %s4, 4
      %s1148 = int_to_ptr.hbm [resolvable:$true] %s1147
      %1150 = dma.vmem_to_hbm [thread:$0]  %s1146, 16, %s1148, [#allocation4]
    $region29: #{model_forward.1} parent=1 // pred_fallthru
      _
    // Predicated region
    $region30: #{model_forward.1} parent=1 // pred_check
      _
    $region31: #{model_forward.1} parent=1 // pred_check_branch
      %1152 = sbr.rel (0) target = $region33
    $region32: #{model_forward.1} parent=1 // pred_region
      _
    $region33: #{model_forward.1} parent=1 // pred_fallthru
      _
    // Predicated region
    $region34: #{model_forward.1} parent=1 // pred_check
      _
    $region35: #{model_forward.1} parent=1 // pred_check_branch
      %1154 = sbr.rel (0) target = $region37
    $region36: #{model_forward.1} parent=1 // pred_region
      %1156 = vsyncadd [#allocation9], 0
      %s1157 = sshll.u32 [#allocation8], 4
      %s1158 = int_to_ptr.vmem [resolvable:$true] %s1157
      %s1159 = sshll.u32 %s6, 4
      %s1160 = int_to_ptr.hbm [resolvable:$true] %s1159
      %1165 = dma.vmem_to_hbm [thread:$0]  %s1158, 4608, %s1160, [#allocation9], 128, 128, 8
    $region37: #{model_forward.1} parent=1 // pred_fallthru
      _
    // Predicated region
    $region38: #{model_forward.1} parent=1 // pred_check
      _
    $region39: #{model_forward.1} parent=1 // pred_check_branch
      %1167 = sbr.rel (0) target = $region41
    $region40: #{model_forward.1} parent=1 // pred_region
      %1169 = vsyncadd [#allocation9], 0
      %s1170 = sshll.u32 [#allocation10], 4
      %s1171 = int_to_ptr.vmem [resolvable:$true] %s1170
      %s1172 = sshll.u32 %s7, 4
      %s1173 = int_to_ptr.hbm [resolvable:$true] %s1172
      %1178 = dma.vmem_to_hbm [thread:$0]  %s1171, 8192, %s1173, [#allocation9], 128, 128, 8
    $region41: #{model_forward.1} parent=1 // pred_fallthru
      _
    // Predicated region
    $region42: #{model_forward.1} parent=1 // pred_check
      _
    $region43: #{model_forward.1} parent=1 // pred_check_branch
      %1180 = sbr.rel (0) target = $region45
    $region44: #{model_forward.1} parent=1 // pred_region
      %1182 = dma.done [#allocation4], 16
    $region45: #{model_forward.1} parent=1 // pred_fallthru
      _
    // Predicated region
    $region46: #{model_forward.1} parent=1 // pred_check
      _
    $region47: #{model_forward.1} parent=1 // pred_check_branch
      %1184 = sbr.rel (0) target = $region49
    $region48: #{model_forward.1} parent=1 // pred_region
      _
    $region49: #{model_forward.1} parent=1 // pred_fallthru
      _
    // Predicated region
    $region50: #{model_forward.1} parent=1 // pred_check
      _
    $region51: #{model_forward.1} parent=1 // pred_check_branch
      %1186 = sbr.rel (0) target = $region53
    $region52: #{model_forward.1} parent=1 // pred_region
      %1188 = dma.done [#allocation9], 4608
    $region53: #{model_forward.1} parent=1 // pred_fallthru
      _
    // Predicated region
    $region54: #{model_forward.1} parent=1 // pred_check
      _
    $region55: #{model_forward.1} parent=1 // pred_check_branch
      %1190 = sbr.rel (0) target = $region57
    $region56: #{model_forward.1} parent=1 // pred_region
      %1192 = dma.done [#allocation9], 8192
    $region57: #{model_forward.1} parent=1 // pred_fallthru
      _
    %1193 = vsyncpa [#allocation3], 1
    %1194 = vsyncpa [#allocation6], 1
    %1195 = vsyncpa [#allocation4], 1
    %1196 = vsyncpa [#allocation9], 1

</llo_original>
